<compile_context>
chip_gen: v7x
topology: tpu7x:2x2x1
jax: 0.10.0
libtpu: 0.0.40
codegen_flags: <defaults>
</compile_context>

<pallas_src>
import functools

import jax
import jax.numpy as jnp
from jax.experimental import pallas as pl
from jax.experimental.pallas import tpu as pltpu

NUM_DRONES = 15
NUM_TARGETS = 50
INPUT_DIM = 2 * (NUM_DRONES + NUM_TARGETS)   # 130
HIDDEN_DIM = 128
OUTPUT_DIM = NUM_DRONES * NUM_TARGETS        # 750

INPUT_DIM_PAD = 256   # 130 -> 256 (clean K tiles; zero-padded, mathematically identical)


def _round_up(x, m):
    return ((x + m - 1) // m) * m


def _policy_kernel(x_ref, w1_ref, b1_ref, w2_ref, b2_ref, o_ref):
    # x_ref : [TB, 256]  bf16
    # w1_ref: [256, 128] bf16      b1_ref: [1, 128] f32
    # w2_ref: [128, 750] bf16      b2_ref: [1, 750] f32
    # o_ref : [TB, 750]  f32
    # Layer 1: bf16 MXU matmul, f32 accumulate, f32 bias + ReLU (VPU).
    h = jnp.dot(x_ref[...], w1_ref[...], preferred_element_type=jnp.float32)
    h = jnp.maximum(h + b1_ref[...], 0.0)

    # Layer 2: bf16 MXU matmul, f32 accumulate, f32 bias.
    logits = jnp.dot(h.astype(jnp.bfloat16), w2_ref[...],
                     preferred_element_type=jnp.float32)
    logits = logits + b2_ref[...]

    # Numerically stable, exact softmax along the lane axis (nn.Softmax(dim=-1)).
    m = jnp.max(logits, axis=-1, keepdims=True)
    e = jnp.exp(logits - m)
    denom = jnp.sum(e, axis=-1, keepdims=True)
    o_ref[...] = e / denom


def prepare_params(w1, b1, w2, b2):
    """One-time weight prep (pad + bf16 cast), hoisted out of the hot path.

    w1:[130,128], b1:[1,128], w2:[128,750], b2:[1,750]  (x @ W convention)."""
    w1_p = jnp.pad(w1, ((0, INPUT_DIM_PAD - INPUT_DIM), (0, 0))).astype(jnp.bfloat16)
    b1_p = b1.reshape(1, HIDDEN_DIM).astype(jnp.float32)
    w2_p = w2.astype(jnp.bfloat16)
    b2_p = b2.reshape(1, OUTPUT_DIM).astype(jnp.float32)
    return w1_p, b1_p, w2_p, b2_p


@functools.partial(jax.jit, static_argnames=("block_b",))
def policy_forward(x, w1_p, b1_p, w2_p, b2_p, *, block_b=1024):
    """Fused forward pass.  x:[B,130] f32, prepared params from prepare_params().
    Returns softmax probabilities [B, 750] (f32)."""
    batch = x.shape[0]

    # Batch tile: 16-row aligned (bf16 sublane packing), capped at block_b and
    # at ~half the batch so large batches always yield >= 2 grid steps
    # (keeps both v7x TensorCores busy under dimension_semantics="parallel").
    half = _round_up((batch + 1) // 2, 16)
    tb = max(16, min(block_b, half))
    batch_pad = _round_up(batch, tb)
    grid = (batch_pad // tb,)

    # Pad batch + feature dims and cast to bf16 in one fused wrapper op.
    x_p = jnp.pad(x, ((0, batch_pad - batch),
                      (0, INPUT_DIM_PAD - INPUT_DIM))).astype(jnp.bfloat16)

    cost = pl.CostEstimate(
        flops=2 * batch_pad * (INPUT_DIM_PAD * HIDDEN_DIM + HIDDEN_DIM * OUTPUT_DIM),
        transcendentals=batch_pad * OUTPUT_DIM,
        bytes_accessed=(x_p.size * 2 + w1_p.size * 2 + w2_p.size * 2
                        + b1_p.size * 4 + b2_p.size * 4
                        + batch_pad * OUTPUT_DIM * 4),
    )

    out_pad = pl.pallas_call(
        _policy_kernel,
        out_shape=jax.ShapeDtypeStruct((batch_pad, OUTPUT_DIM), jnp.float32),
        grid=grid,
        in_specs=[
            pl.BlockSpec((tb, INPUT_DIM_PAD), lambda i: (i, 0)),          # x tile (bf16)
            pl.BlockSpec((INPUT_DIM_PAD, HIDDEN_DIM), lambda i: (0, 0)),  # w1 (resident)
            pl.BlockSpec((1, HIDDEN_DIM), lambda i: (0, 0)),              # b1 (resident)
            pl.BlockSpec((HIDDEN_DIM, OUTPUT_DIM), lambda i: (0, 0)),     # w2 (resident)
            pl.BlockSpec((1, OUTPUT_DIM), lambda i: (0, 0)),              # b2 (resident)
        ],
        out_specs=pl.BlockSpec((tb, OUTPUT_DIM), lambda i: (i, 0)),
        compiler_params=pltpu.CompilerParams(
            dimension_semantics=("parallel",),      # shard batch tiles across v7x TCs
            vmem_limit_bytes=32 * 1024 * 1024),
        cost_estimate=cost,
    )(x_p, w1_p, b1_p, w2_p, b2_p)

    # Only the (leading) batch dim may be padded; the lane dim is exact (750),
    # so no minor-dim slice copy is incurred.  For tile-aligned batches this is
    # a no-op.
    return out_pad[:batch] if batch_pad != batch else out_pad


def init_params(key):
    """Deterministic init mimicking torch.nn.Linear default (U[-1/sqrt(fan_in), +1/sqrt(fan_in)]).
    Stored as [in, out] (transposed vs torch's [out, in]) so the kernel does x @ W."""
    k1, k2, k3, k4 = jax.random.split(key, 4)
    bound1 = 1.0 / jnp.sqrt(jnp.float32(INPUT_DIM))
    bound2 = 1.0 / jnp.sqrt(jnp.float32(HIDDEN_DIM))
    w1 = jax.random.uniform(k1, (INPUT_DIM, HIDDEN_DIM), jnp.float32, -bound1, bound1)
    b1 = jax.random.uniform(k2, (1, HIDDEN_DIM), jnp.float32, -bound1, bound1)
    w2 = jax.random.uniform(k3, (HIDDEN_DIM, OUTPUT_DIM), jnp.float32, -bound2, bound2)
    b2 = jax.random.uniform(k4, (1, OUTPUT_DIM), jnp.float32, -bound2, bound2)
    return w1, b1, w2, b2


def reference_forward_f32(x, w1, b1, w2, b2):
    """Plain-JAX f32 reference mirroring the PyTorch module."""
    h = jnp.maximum(x @ w1 + b1, 0.0)
    logits = h @ w2 + b2
    return jax.nn.softmax(logits, axis=-1)


def reference_forward_bf16(x, w1, b1, w2, b2):
    """Reference using the same bf16 MXU operands as the kernel (tight comparison)."""
    h = jnp.dot(x.astype(jnp.bfloat16), w1.astype(jnp.bfloat16),
                preferred_element_type=jnp.float32) + b1
    h = jnp.maximum(h, 0.0)
    logits = jnp.dot(h.astype(jnp.bfloat16), w2.astype(jnp.bfloat16),
                     preferred_element_type=jnp.float32) + b2
    return jax.nn.softmax(logits, axis=-1)


if __name__ == "__main__":
    key = jax.random.PRNGKey(0)
    kx, kp = jax.random.split(key)

    batch = 8  # small batch for the smoke test; the grid/tiling scales to PPO batches
    x = jax.random.normal(kx, (batch, INPUT_DIM), jnp.float32)
    w1, b1, w2, b2 = init_params(kp)
    params = prepare_params(w1, b1, w2, b2)

    out = policy_forward(x, *params)
    out = jax.block_until_ready(out)

    assert out.shape == (batch, OUTPUT_DIM)
    # Exact softmax normalization -> rows sum to 1 up to f32 rounding.
    assert jnp.allclose(jnp.sum(out, axis=-1), 1.0, atol=1e-3)
    # Tight match against a reference using the same bf16 MXU operands.
    ref_bf16 = reference_forward_bf16(x, w1, b1, w2, b2)
    assert jnp.allclose(out, ref_bf16, atol=2e-3, rtol=1e-2)
    # Loose match against the pure-f32 torch-equivalent reference.
    ref_f32 = reference_forward_f32(x, w1, b1, w2, b2)
    assert jnp.allclose(out, ref_f32, atol=2e-2, rtol=5e-2)

    print("KERNEL_OK")
</pallas_src>

<mosaic_0001>
module attributes {stable_mosaic.version = 11 : i64} {
  func.func @_policy_kernel(%arg0: i32, %arg1: memref<16x256xbf16, #tpu.memory_space<vmem>>, %arg2: memref<256x128xbf16, #tpu.memory_space<vmem>>, %arg3: memref<1x128xf32, #tpu.memory_space<vmem>>, %arg4: memref<128x750xbf16, #tpu.memory_space<vmem>>, %arg5: memref<1x750xf32, #tpu.memory_space<vmem>>, %arg6: memref<16x750xf32, #tpu.memory_space<vmem>>) attributes {dimension_semantics = [#tpu.dimension_semantics<parallel>], iteration_bounds = array<i64: 1>, scalar_prefetch = 0 : i64, scratch_operands = 0 : i64, tpu.core_type = #tpu.core_type<tc>, window_params = [{transform_indices = @transform_0, window_bounds = array<i64: 16, 256>}, {pipeline_mode = #tpu.pipeline_mode<synchronous>, transform_indices = @transform_1, window_bounds = array<i64: 256, 128>}, {pipeline_mode = #tpu.pipeline_mode<synchronous>, transform_indices = @transform_2, window_bounds = array<i64: 1, 128>}, {pipeline_mode = #tpu.pipeline_mode<synchronous>, transform_indices = @transform_3, window_bounds = array<i64: 128, 750>}, {pipeline_mode = #tpu.pipeline_mode<synchronous>, transform_indices = @transform_4, window_bounds = array<i64: 1, 750>}, {transform_indices = @transform_5, window_bounds = array<i64: 16, 750>}]} {
    %c0 = arith.constant 0 : index
    %c0_0 = arith.constant 0 : index
    %0 = vector.load %arg1[%c0, %c0_0] : memref<16x256xbf16, #tpu.memory_space<vmem>>, vector<16x256xbf16>
    %c0_1 = arith.constant 0 : index
    %c0_2 = arith.constant 0 : index
    %1 = vector.load %arg2[%c0_1, %c0_2] : memref<256x128xbf16, #tpu.memory_space<vmem>>, vector<256x128xbf16>
    %cst = arith.constant dense<0.000000e+00> : vector<16x128xf32>
    %2 = tpu.matmul %0, %1, %cst {dimension_numbers = #tpu.dot_dimension_numbers<[1], [0], [0], [1], [0, 0, 1, 1], [], []>} : vector<16x256xbf16>, vector<256x128xbf16>, vector<16x128xf32> -> vector<16x128xf32>
    %c0_3 = arith.constant 0 : index
    %c0_4 = arith.constant 0 : index
    %3 = vector.load %arg3[%c0_3, %c0_4] : memref<1x128xf32, #tpu.memory_space<vmem>>, vector<1x128xf32>
    %4 = vector.broadcast %3 : vector<1x128xf32> to vector<16x128xf32>
    %5 = arith.addf %2, %4 : vector<16x128xf32>
    %cst_5 = arith.constant 0.000000e+00 : f32
    %6 = vector.broadcast %cst_5 : f32 to vector<16x128xf32>
    %7 = arith.maximumf %5, %6 : vector<16x128xf32>
    %8 = arith.truncf %7 : vector<16x128xf32> to vector<16x128xbf16>
    %c0_6 = arith.constant 0 : index
    %c0_7 = arith.constant 0 : index
    %9 = vector.load %arg4[%c0_6, %c0_7] : memref<128x750xbf16, #tpu.memory_space<vmem>>, vector<128x750xbf16>
    %cst_8 = arith.constant dense<0.000000e+00> : vector<16x750xf32>
    %10 = tpu.matmul %8, %9, %cst_8 {dimension_numbers = #tpu.dot_dimension_numbers<[1], [0], [0], [1], [0, 0, 1, 1], [], []>} : vector<16x128xbf16>, vector<128x750xbf16>, vector<16x750xf32> -> vector<16x750xf32>
    %c0_9 = arith.constant 0 : index
    %c0_10 = arith.constant 0 : index
    %11 = vector.load %arg5[%c0_9, %c0_10] : memref<1x750xf32, #tpu.memory_space<vmem>>, vector<1x750xf32>
    %12 = vector.broadcast %11 : vector<1x750xf32> to vector<16x750xf32>
    %13 = arith.addf %10, %12 : vector<16x750xf32>
    %cst_11 = arith.constant dense<0xFF800000> : vector<16xf32>
    %14 = vector.multi_reduction <maximumf>, %13, %cst_11 [1] : vector<16x750xf32> to vector<16xf32>
    %15 = vector.shape_cast %14 : vector<16xf32> to vector<16x1xf32>
    %16 = vector.broadcast %15 : vector<16x1xf32> to vector<16x750xf32>
    %17 = arith.subf %13, %16 : vector<16x750xf32>
    %18 = math.exp %17 : vector<16x750xf32>
    %cst_12 = arith.constant dense<0.000000e+00> : vector<16xf32>
    %19 = vector.multi_reduction <add>, %18, %cst_12 [1] : vector<16x750xf32> to vector<16xf32>
    %20 = vector.shape_cast %19 : vector<16xf32> to vector<16x1xf32>
    %21 = vector.broadcast %20 : vector<16x1xf32> to vector<16x750xf32>
    %22 = arith.divf %18, %21 : vector<16x750xf32>
    %c0_13 = arith.constant 0 : index
    %c0_14 = arith.constant 0 : index
    %23 = vector.load %arg6[%c0_13, %c0_14] : memref<16x750xf32, #tpu.memory_space<vmem>>, vector<16x750xf32>
    tpu.vector_store %arg6[%c0_13, %c0_14], %22 {strides = array<i32>} : memref<16x750xf32, #tpu.memory_space<vmem>>, vector<16x750xf32>,
    return
  }
  func.func @transform_0(%arg0: i32) -> (i32, i32) {
    %c0_i32 = arith.constant 0 : i32
    %c0_i32_0 = arith.constant 0 : i32
    return %arg0, %c0_i32 : i32, i32
  }
  func.func @transform_1(%arg0: i32) -> (i32, i32) {
    %c0_i32 = arith.constant 0 : i32
    %c0_i32_0 = arith.constant 0 : i32
    %c0_i32_1 = arith.constant 0 : i32
    return %c0_i32, %c0_i32_0 : i32, i32
  }
  func.func @transform_2(%arg0: i32) -> (i32, i32) {
    %c0_i32 = arith.constant 0 : i32
    %c0_i32_0 = arith.constant 0 : i32
    %c0_i32_1 = arith.constant 0 : i32
    return %c0_i32, %c0_i32_0 : i32, i32
  }
  func.func @transform_3(%arg0: i32) -> (i32, i32) {
    %c0_i32 = arith.constant 0 : i32
    %c0_i32_0 = arith.constant 0 : i32
    %c0_i32_1 = arith.constant 0 : i32
    return %c0_i32, %c0_i32_0 : i32, i32
  }
  func.func @transform_4(%arg0: i32) -> (i32, i32) {
    %c0_i32 = arith.constant 0 : i32
    %c0_i32_0 = arith.constant 0 : i32
    %c0_i32_1 = arith.constant 0 : i32
    return %c0_i32, %c0_i32_0 : i32, i32
  }
  func.func @transform_5(%arg0: i32) -> (i32, i32) {
    %c0_i32 = arith.constant 0 : i32
    %c0_i32_0 = arith.constant 0 : i32
    return %arg0, %c0_i32 : i32, i32
  }
}

</mosaic_0001>

<llo_original>
// kernel: policy_forward.1
$region0: #{policy_forward.1}
  #allocation0 [shape = 'u32[]', space=smem, size = 0x4, offset = 0x4, fixed_abs, tag = 'smem constant byte address 0x4 - core index']
  #allocation1 [shape = 'u32[144,128]{1,0:T(1,128)}', space=vmem, size = 0x12000, scoped, tag = 'internal scratch']
  %s0 = inlined_call_operand.vmem [shape: bf16[16,256], index: 0, kind: input, shape index: {}]
  %s1 = inlined_call_operand.vmem [shape: bf16[256,128], index: 1, kind: input, shape index: {}]
  %s2 = inlined_call_operand.vmem [shape: f32[1,128], index: 2, kind: input, shape index: {}]
  %s3 = inlined_call_operand.vmem [shape: bf16[128,750], index: 3, kind: input, shape index: {}]
  %s4 = inlined_call_operand.vmem [shape: f32[1,750], index: 4, kind: input, shape index: {}]
  %s5 = inlined_call_operand.vmem [shape: f32[16,750], index: 5, kind: output, shape index: {}]
  %s6 = sld [smem:[#allocation0]]
  $region30: #{policy_forward.1} parent=0
    _
  %s8 = ssub.s32 1, %s6
  %s9 = scalar_select 0, %s8, %s6
  // Predicated region
  $region2: #{policy_forward.1} parent=0 // pred_check
    _
  $region3: #{policy_forward.1} parent=0 // pred_check_branch
    %11 = sbr.rel (0) target = $region5
  $region4: #{policy_forward.1} parent=0 // pred_region
    _
  $region5: #{policy_forward.1} parent=0 // pred_fallthru
    _
  // Predicated region
  $region6: #{policy_forward.1} parent=0 // pred_check
    _
  $region7: #{policy_forward.1} parent=0 // pred_check_branch
    %13 = sbr.rel (0) target = $region9
  $region8: #{policy_forward.1} parent=0 // pred_region
    _
  $region9: #{policy_forward.1} parent=0 // pred_fallthru
    _
  // Predicated region
  $region10: #{policy_forward.1} parent=0 // pred_check
    _
  $region11: #{policy_forward.1} parent=0 // pred_check_branch
    %15 = sbr.rel (0) target = $region13
  $region12: #{policy_forward.1} parent=0 // pred_region
    _
  $region13: #{policy_forward.1} parent=0 // pred_fallthru
    _
  // Predicated region
  $region14: #{policy_forward.1} parent=0 // pred_check
    _
  $region15: #{policy_forward.1} parent=0 // pred_check_branch
    %17 = sbr.rel (0) target = $region17
  $region16: #{policy_forward.1} parent=0 // pred_region
    _
  $region17: #{policy_forward.1} parent=0 // pred_fallthru
    _
  // Predicated region
  $region18: #{policy_forward.1} parent=0 // pred_check
    _
  $region19: #{policy_forward.1} parent=0 // pred_check_branch
    %19 = sbr.rel (0) target = $region21
  $region20: #{policy_forward.1} parent=0 // pred_region
    _
  $region21: #{policy_forward.1} parent=0 // pred_fallthru
    _
  %v21 = vld [vmem:[%s0] sm:$0xff]
  %v22 = vld [vmem:[%s0 + $0x8] sm:$0xff]
  %v23 = vld [vmem:[%s1] sm:$0xf]
  %v24 = vld [vmem:[%s1 + $0x4] sm:$0xf]
  %v25 = vld [vmem:[%s1 + $0x8] sm:$0xf]
  %v26 = vld [vmem:[%s1 + $0xc] sm:$0xf]
  %v27 = vld [vmem:[%s1 + $0x10] sm:$0xf]
  %v28 = vld [vmem:[%s1 + $0x14] sm:$0xf]
  %v29 = vld [vmem:[%s1 + $0x18] sm:$0xf]
  %v30 = vld [vmem:[%s1 + $0x1c] sm:$0xf]
  %v31 = vld [vmem:[%s1 + $0x20] sm:$0xf]
  %v32 = vld [vmem:[%s1 + $0x24] sm:$0xf]
  %v33 = vld [vmem:[%s1 + $0x28] sm:$0xf]
  %v34 = vld [vmem:[%s1 + $0x2c] sm:$0xf]
  %v35 = vld [vmem:[%s1 + $0x30] sm:$0xf]
  %v36 = vld [vmem:[%s1 + $0x34] sm:$0xf]
  %v37 = vld [vmem:[%s1 + $0x38] sm:$0xf]
  %v38 = vld [vmem:[%s1 + $0x3c] sm:$0xf]
  %v39 = vld [vmem:[%s1 + $0x40] sm:$0xf]
  %v40 = vld [vmem:[%s1 + $0x44] sm:$0xf]
  %v41 = vld [vmem:[%s1 + $0x48] sm:$0xf]
  %v42 = vld [vmem:[%s1 + $0x4c] sm:$0xf]
  %v43 = vld [vmem:[%s1 + $0x50] sm:$0xf]
  %v44 = vld [vmem:[%s1 + $0x54] sm:$0xf]
  %v45 = vld [vmem:[%s1 + $0x58] sm:$0xf]
  %v46 = vld [vmem:[%s1 + $0x5c] sm:$0xf]
  %v47 = vld [vmem:[%s1 + $0x60] sm:$0xf]
  %v48 = vld [vmem:[%s1 + $0x64] sm:$0xf]
  %v49 = vld [vmem:[%s1 + $0x68] sm:$0xf]
  %v50 = vld [vmem:[%s1 + $0x6c] sm:$0xf]
  %v51 = vld [vmem:[%s1 + $0x70] sm:$0xf]
  %v52 = vld [vmem:[%s1 + $0x74] sm:$0xf]
  %v53 = vld [vmem:[%s1 + $0x78] sm:$0xf]
  %v54 = vld [vmem:[%s1 + $0x7c] sm:$0xf]
  %v55 = vld [vmem:[%s2] sm:$0x1]
  %v57 = vlaneseq
  %v58 = vshrl.u32 %v57, 7
  %v59 = vsub.s32 0, %v58
  %v60 = vrot.slane %v55, %v59
  %v64 = vunpack.c.l.b16 %v21
  %v65 = vunpack.c.h.b16 %v21
  %v66 = vunpack.c.l.b16 %v22
  %v67 = vunpack.c.h.b16 %v22
  %v68 = vpack.c.b16 %v66, %v64
  %v69 = vpack.c.b16 %v67, %v65
  %v104 = vunpack.c.l.b16 %v23
  %v105 = vunpack.c.l.b16 %v24
  %v106 = vunpack.c.l.b16 %v25
  %v107 = vunpack.c.l.b16 %v26
  %v108 = vunpack.c.l.b16 %v27
  %v109 = vunpack.c.l.b16 %v28
  %v110 = vunpack.c.l.b16 %v29
  %v111 = vunpack.c.l.b16 %v30
  %v112 = vunpack.c.l.b16 %v31
  %v113 = vunpack.c.l.b16 %v32
  %v114 = vunpack.c.l.b16 %v33
  %v115 = vunpack.c.l.b16 %v34
  %v116 = vunpack.c.l.b16 %v35
  %v117 = vunpack.c.l.b16 %v36
  %v118 = vunpack.c.l.b16 %v37
  %v119 = vunpack.c.l.b16 %v38
  %v120 = vunpack.c.l.b16 %v39
  %v121 = vunpack.c.l.b16 %v40
  %v122 = vunpack.c.l.b16 %v41
  %v123 = vunpack.c.l.b16 %v42
  %v124 = vunpack.c.l.b16 %v43
  %v125 = vunpack.c.l.b16 %v44
  %v126 = vunpack.c.l.b16 %v45
  %v127 = vunpack.c.l.b16 %v46
  %v128 = vunpack.c.l.b16 %v47
  %v129 = vunpack.c.l.b16 %v48
  %v130 = vunpack.c.l.b16 %v49
  %v131 = vunpack.c.l.b16 %v50
  %v132 = vunpack.c.l.b16 %v51
  %v133 = vunpack.c.l.b16 %v52
  %v134 = vunpack.c.l.b16 %v53
  %v135 = vunpack.c.l.b16 %v54
  %v136 = vpack.c.b16 %v105, %v104
  %v137 = vpack.c.b16 %v107, %v106
  %v138 = vpack.c.b16 %v109, %v108
  %v139 = vpack.c.b16 %v111, %v110
  %v140 = vpack.c.b16 %v113, %v112
  %v141 = vpack.c.b16 %v115, %v114
  %v142 = vpack.c.b16 %v117, %v116
  %v143 = vpack.c.b16 %v119, %v118
  %v144 = vpack.c.b16 %v121, %v120
  %v145 = vpack.c.b16 %v123, %v122
  %v146 = vpack.c.b16 %v125, %v124
  %v147 = vpack.c.b16 %v127, %v126
  %v148 = vpack.c.b16 %v129, %v128
  %v149 = vpack.c.b16 %v131, %v130
  %v150 = vpack.c.b16 %v133, %v132
  %v151 = vpack.c.b16 %v135, %v134
  %168 = vmatprep.subr.bf16.mxu0 0
  %169 = vmatpush1.bf16.msra.mxu0 %v136
  %170 = vmatprep.subr.bf16.mxu0 0
  %171 = vmatpush1.bf16.msra.mxu0 %v137
  %172 = vmatprep.subr.bf16.mxu0 0
  %173 = vmatpush1.bf16.msra.mxu0 %v138
  %174 = vmatprep.subr.bf16.mxu0 0
  %175 = vmatpush1.bf16.msra.mxu0 %v139
  %176 = vmatprep.subr.bf16.mxu0 0
  %177 = vmatpush1.bf16.msra.mxu0 %v140
  %178 = vmatprep.subr.bf16.mxu0 0
  %179 = vmatpush1.bf16.msra.mxu0 %v141
  %180 = vmatprep.subr.bf16.mxu0 0
  %181 = vmatpush1.bf16.msra.mxu0 %v142
  %182 = vmatprep.subr.bf16.mxu0 0
  %183 = vmatpush1.bf16.msra.mxu0 %v143
  %184 = vmatprep.subr.bf16.mxu0 0
  %185 = vmatpush1.bf16.msra.mxu0 %v144
  %186 = vmatprep.subr.bf16.mxu0 0
  %187 = vmatpush1.bf16.msra.mxu0 %v145
  %188 = vmatprep.subr.bf16.mxu0 0
  %189 = vmatpush1.bf16.msra.mxu0 %v146
  %190 = vmatprep.subr.bf16.mxu0 0
  %191 = vmatpush1.bf16.msra.mxu0 %v147
  %192 = vmatprep.subr.bf16.mxu0 0
  %193 = vmatpush1.bf16.msra.mxu0 %v148
  %194 = vmatprep.subr.bf16.mxu0 0
  %195 = vmatpush1.bf16.msra.mxu0 %v149
  %196 = vmatprep.subr.bf16.mxu0 0
  %197 = vmatpush1.bf16.msra.mxu0 %v150
  %198 = vmatprep.subr.bf16.mxu0 0
  %199 = vmatpush1.bf16.msra.mxu0 %v151
  %200 = vmatprep.mubr.bf16.mxu0 %v69
  %201 = vmatmul.mubr.bf16.gmra.mrb[0].mxu0 %v68
  %v202 = vpop.f32.mrb[0].mxu0
  %v203 = vadd.f32 %v60, %v202
  %v204 = vpop.f32.mrb[0].mxu0
  %v205 = vpop.f32.mrb[0].mxu0
  %v206 = vadd.f32 %v60, %v205
  %v207 = vpop.f32.mrb[0].mxu0
  %208 = vdwg.mxu0
  %v209 = vmax.f32 %v203, 0.0
  %v210 = vmax.f32 %v206, 0.0
  %v211 = vpack.c.bf16 %v210, %v209
  %v212 = vld [vmem:[%s3] sm:$0xff]
  %v213 = vld [vmem:[%s3 + $0x8] sm:$0xff]
  %v214 = vld [vmem:[%s3 + $0x10] sm:$0xff]
  %v215 = vld [vmem:[%s3 + $0x18] sm:$0xff]
  %v216 = vld [vmem:[%s3 + $0x20] sm:$0xff]
  %v217 = vld [vmem:[%s3 + $0x28] sm:$0xff]
  %v218 = vld [vmem:[%s3 + $0x30] sm:$0xff]
  %v219 = vld [vmem:[%s3 + $0x38] sm:$0xff]
  %v220 = vld [vmem:[%s3 + $0x40] sm:$0xff]
  %v221 = vld [vmem:[%s3 + $0x48] sm:$0xff]
  %v222 = vld [vmem:[%s3 + $0x50] sm:$0xff]
  %v223 = vld [vmem:[%s3 + $0x58] sm:$0xff]
  %v224 = vld [vmem:[%s3 + $0x60] sm:$0xff]
  %v225 = vld [vmem:[%s3 + $0x68] sm:$0xff]
  %v226 = vld [vmem:[%s3 + $0x70] sm:$0xff]
  %v227 = vld [vmem:[%s3 + $0x78] sm:$0xff]
  %v228 = vld [vmem:[%s3 + $0x80] sm:$0xff]
  %v229 = vld [vmem:[%s3 + $0x88] sm:$0xff]
  %v230 = vld [vmem:[%s3 + $0x90] sm:$0xff]
  %v231 = vld [vmem:[%s3 + $0x98] sm:$0xff]
  %v232 = vld [vmem:[%s3 + $0xa0] sm:$0xff]
  %v233 = vld [vmem:[%s3 + $0xa8] sm:$0xff]
  %v234 = vld [vmem:[%s3 + $0xb0] sm:$0xff]
  %v235 = vld [vmem:[%s3 + $0xb8] sm:$0xff]
  %v236 = vld [vmem:[%s3 + $0xc0] sm:$0xff]
  %v237 = vld [vmem:[%s3 + $0xc8] sm:$0xff]
  %v238 = vld [vmem:[%s3 + $0xd0] sm:$0xff]
  %v239 = vld [vmem:[%s3 + $0xd8] sm:$0xff]
  %v240 = vld [vmem:[%s3 + $0xe0] sm:$0xff]
  %v241 = vld [vmem:[%s3 + $0xe8] sm:$0xff]
  %v242 = vld [vmem:[%s3 + $0xf0] sm:$0xff]
  %v243 = vld [vmem:[%s3 + $0xf8] sm:$0xff]
  %v244 = vld [vmem:[%s3 + $0x100] sm:$0xff]
  %v245 = vld [vmem:[%s3 + $0x108] sm:$0xff]
  %v246 = vld [vmem:[%s3 + $0x110] sm:$0xff]
  %v247 = vld [vmem:[%s3 + $0x118] sm:$0xff]
  %v248 = vld [vmem:[%s3 + $0x120] sm:$0xff]
  %v249 = vld [vmem:[%s3 + $0x128] sm:$0xff]
  %v250 = vld [vmem:[%s3 + $0x130] sm:$0xff]
  %v251 = vld [vmem:[%s3 + $0x138] sm:$0xff]
  %v252 = vld [vmem:[%s3 + $0x140] sm:$0xff]
  %v253 = vld [vmem:[%s3 + $0x148] sm:$0xff]
  %v254 = vld [vmem:[%s3 + $0x150] sm:$0xff]
  %v255 = vld [vmem:[%s3 + $0x158] sm:$0xff]
  %v256 = vld [vmem:[%s3 + $0x160] sm:$0xff]
  %v257 = vld [vmem:[%s3 + $0x168] sm:$0xff]
  %v258 = vld [vmem:[%s3 + $0x170] sm:$0xff]
  %v259 = vld [vmem:[%s3 + $0x178] sm:$0xff]
  %v260 = vld [vmem:[%s4] sm:$0x3f]
  %v262 = vlaneseq
  %v263 = vshrl.u32 %v262, 7
  %v264 = vsub.s32 0, %v263
  %v265 = vrot.slane %v260, %v264
  %v266 = vlaneseq
  %v267 = vshrl.u32 %v266, 7
  %v268 = vsub.s32 1, %v267
  %v269 = vrot.slane %v260, %v268
  %v270 = vlaneseq
  %v271 = vshrl.u32 %v270, 7
  %v272 = vsub.s32 2, %v271
  %v273 = vrot.slane %v260, %v272
  %v274 = vlaneseq
  %v275 = vshrl.u32 %v274, 7
  %v276 = vsub.s32 3, %v275
  %v277 = vrot.slane %v260, %v276
  %v278 = vlaneseq
  %v279 = vshrl.u32 %v278, 7
  %v280 = vsub.s32 4, %v279
  %v281 = vrot.slane %v260, %v280
  %v282 = vlaneseq
  %v283 = vshrl.u32 %v282, 7
  %v284 = vsub.s32 5, %v283
  %v285 = vrot.slane %v260, %v284
  %v340 = vunpack.c.l.b16 %v212
  %v341 = vunpack.c.h.b16 %v212
  %v342 = vunpack.c.l.b16 %v213
  %v343 = vunpack.c.h.b16 %v213
  %v344 = vunpack.c.l.b16 %v214
  %v345 = vunpack.c.h.b16 %v214
  %v346 = vunpack.c.l.b16 %v215
  %v347 = vunpack.c.h.b16 %v215
  %v348 = vunpack.c.l.b16 %v216
  %v349 = vunpack.c.h.b16 %v216
  %v350 = vunpack.c.l.b16 %v217
  %v351 = vunpack.c.h.b16 %v217
  %v352 = vunpack.c.l.b16 %v218
  %v353 = vunpack.c.h.b16 %v218
  %v354 = vunpack.c.l.b16 %v219
  %v355 = vunpack.c.h.b16 %v219
  %v356 = vunpack.c.l.b16 %v220
  %v357 = vunpack.c.h.b16 %v220
  %v358 = vunpack.c.l.b16 %v221
  %v359 = vunpack.c.h.b16 %v221
  %v360 = vunpack.c.l.b16 %v222
  %v361 = vunpack.c.h.b16 %v222
  %v362 = vunpack.c.l.b16 %v223
  %v363 = vunpack.c.h.b16 %v223
  %v364 = vunpack.c.l.b16 %v224
  %v365 = vunpack.c.h.b16 %v224
  %v366 = vunpack.c.l.b16 %v225
  %v367 = vunpack.c.h.b16 %v225
  %v368 = vunpack.c.l.b16 %v226
  %v369 = vunpack.c.h.b16 %v226
  %v370 = vunpack.c.l.b16 %v227
  %v371 = vunpack.c.h.b16 %v227
  %v372 = vunpack.c.l.b16 %v228
  %v373 = vunpack.c.h.b16 %v228
  %v374 = vunpack.c.l.b16 %v229
  %v375 = vunpack.c.h.b16 %v229
  %v376 = vunpack.c.l.b16 %v230
  %v377 = vunpack.c.h.b16 %v230
  %v378 = vunpack.c.l.b16 %v231
  %v379 = vunpack.c.h.b16 %v231
  %v380 = vunpack.c.l.b16 %v232
  %v381 = vunpack.c.h.b16 %v232
  %v382 = vunpack.c.l.b16 %v233
  %v383 = vunpack.c.h.b16 %v233
  %v384 = vunpack.c.l.b16 %v234
  %v385 = vunpack.c.h.b16 %v234
  %v386 = vunpack.c.l.b16 %v235
  %v387 = vunpack.c.h.b16 %v235
  %v388 = vunpack.c.l.b16 %v236
  %v389 = vunpack.c.h.b16 %v236
  %v390 = vunpack.c.l.b16 %v237
  %v391 = vunpack.c.h.b16 %v237
  %v392 = vunpack.c.l.b16 %v238
  %v393 = vunpack.c.h.b16 %v238
  %v394 = vunpack.c.l.b16 %v239
  %v395 = vunpack.c.h.b16 %v239
  %v396 = vunpack.c.l.b16 %v240
  %v397 = vunpack.c.h.b16 %v240
  %v398 = vunpack.c.l.b16 %v241
  %v399 = vunpack.c.h.b16 %v241
  %v400 = vunpack.c.l.b16 %v242
  %v401 = vunpack.c.h.b16 %v242
  %v402 = vunpack.c.l.b16 %v243
  %v403 = vunpack.c.h.b16 %v243
  %v404 = vunpack.c.l.b16 %v244
  %v405 = vunpack.c.h.b16 %v244
  %v406 = vunpack.c.l.b16 %v245
  %v407 = vunpack.c.h.b16 %v245
  %v408 = vunpack.c.l.b16 %v246
  %v409 = vunpack.c.h.b16 %v246
  %v410 = vunpack.c.l.b16 %v247
  %v411 = vunpack.c.h.b16 %v247
  %v412 = vunpack.c.l.b16 %v248
  %v413 = vunpack.c.h.b16 %v248
  %v414 = vunpack.c.l.b16 %v249
  %v415 = vunpack.c.h.b16 %v249
  %v416 = vunpack.c.l.b16 %v250
  %v417 = vunpack.c.h.b16 %v250
  %v418 = vunpack.c.l.b16 %v251
  %v419 = vunpack.c.h.b16 %v251
  %v420 = vunpack.c.l.b16 %v252
  %v421 = vunpack.c.h.b16 %v252
  %v422 = vunpack.c.l.b16 %v253
  %v423 = vunpack.c.h.b16 %v253
  %v424 = vunpack.c.l.b16 %v254
  %v425 = vunpack.c.h.b16 %v254
  %v426 = vunpack.c.l.b16 %v255
  %v427 = vunpack.c.h.b16 %v255
  %v428 = vunpack.c.l.b16 %v256
  %v429 = vunpack.c.h.b16 %v256
  %v430 = vunpack.c.l.b16 %v257
  %v431 = vunpack.c.h.b16 %v257
  %v432 = vunpack.c.l.b16 %v258
  %v433 = vunpack.c.h.b16 %v258
  %v434 = vunpack.c.l.b16 %v259
  %v435 = vunpack.c.h.b16 %v259
  %v436 = vpack.c.b16 %v346, %v340
  %v437 = vpack.c.b16 %v347, %v341
  %v438 = vpack.c.b16 %v348, %v342
  %v439 = vpack.c.b16 %v349, %v343
  %v440 = vpack.c.b16 %v350, %v344
  %v441 = vpack.c.b16 %v351, %v345
  %v442 = vpack.c.b16 %v358, %v352
  %v443 = vpack.c.b16 %v359, %v353
  %v444 = vpack.c.b16 %v360, %v354
  %v445 = vpack.c.b16 %v361, %v355
  %v446 = vpack.c.b16 %v362, %v356
  %v447 = vpack.c.b16 %v363, %v357
  %v448 = vpack.c.b16 %v370, %v364
  %v449 = vpack.c.b16 %v371, %v365
  %v450 = vpack.c.b16 %v372, %v366
  %v451 = vpack.c.b16 %v373, %v367
  %v452 = vpack.c.b16 %v374, %v368
  %v453 = vpack.c.b16 %v375, %v369
  %v454 = vpack.c.b16 %v382, %v376
  %v455 = vpack.c.b16 %v383, %v377
  %v456 = vpack.c.b16 %v384, %v378
  %v457 = vpack.c.b16 %v385, %v379
  %v458 = vpack.c.b16 %v386, %v380
  %v459 = vpack.c.b16 %v387, %v381
  %v460 = vpack.c.b16 %v394, %v388
  %v461 = vpack.c.b16 %v395, %v389
  %v462 = vpack.c.b16 %v396, %v390
  %v463 = vpack.c.b16 %v397, %v391
  %v464 = vpack.c.b16 %v398, %v392
  %v465 = vpack.c.b16 %v399, %v393
  %v466 = vpack.c.b16 %v406, %v400
  %v467 = vpack.c.b16 %v407, %v401
  %v468 = vpack.c.b16 %v408, %v402
  %v469 = vpack.c.b16 %v409, %v403
  %v470 = vpack.c.b16 %v410, %v404
  %v471 = vpack.c.b16 %v411, %v405
  %v472 = vpack.c.b16 %v418, %v412
  %v473 = vpack.c.b16 %v419, %v413
  %v474 = vpack.c.b16 %v420, %v414
  %v475 = vpack.c.b16 %v421, %v415
  %v476 = vpack.c.b16 %v422, %v416
  %v477 = vpack.c.b16 %v423, %v417
  %v478 = vpack.c.b16 %v430, %v424
  %v479 = vpack.c.b16 %v431, %v425
  %v480 = vpack.c.b16 %v432, %v426
  %v481 = vpack.c.b16 %v433, %v427
  %v482 = vpack.c.b16 %v434, %v428
  %v483 = vpack.c.b16 %v435, %v429
  %532 = vmatprep.subr.bf16.mxu0 %v437
  %533 = vmatpush1.bf16.msra.mxu0 %v436
  %534 = vmatprep.subr.bf16.mxu0 %v443
  %535 = vmatpush1.bf16.msra.mxu0 %v442
  %536 = vmatprep.subr.bf16.mxu0 %v449
  %537 = vmatpush1.bf16.msra.mxu0 %v448
  %538 = vmatprep.subr.bf16.mxu0 %v455
  %539 = vmatpush1.bf16.msra.mxu0 %v454
  %540 = vmatprep.subr.bf16.mxu0 %v461
  %541 = vmatpush1.bf16.msra.mxu0 %v460
  %542 = vmatprep.subr.bf16.mxu0 %v467
  %543 = vmatpush1.bf16.msra.mxu0 %v466
  %544 = vmatprep.subr.bf16.mxu0 %v473
  %545 = vmatpush1.bf16.msra.mxu0 %v472
  %546 = vmatprep.subr.bf16.mxu0 %v479
  %547 = vmatpush1.bf16.msra.mxu0 %v478
  %548 = vmatprep.subr.bf16.mxu0 0
  %549 = vmatpush1.bf16.msra.mxu0 0
  %550 = vmatprep.subr.bf16.mxu0 0
  %551 = vmatpush1.bf16.msra.mxu0 0
  %552 = vmatprep.subr.bf16.mxu0 0
  %553 = vmatpush1.bf16.msra.mxu0 0
  %554 = vmatprep.subr.bf16.mxu0 0
  %555 = vmatpush1.bf16.msra.mxu0 0
  %556 = vmatprep.subr.bf16.mxu0 0
  %557 = vmatpush1.bf16.msra.mxu0 0
  %558 = vmatprep.subr.bf16.mxu0 0
  %559 = vmatpush1.bf16.msra.mxu0 0
  %560 = vmatprep.subr.bf16.mxu0 0
  %561 = vmatpush1.bf16.msra.mxu0 0
  %562 = vmatprep.subr.bf16.mxu0 0
  %563 = vmatpush1.bf16.msra.mxu0 0
  %564 = vmatprep.mubr.bf16.mxu0 0
  %565 = vmatmul.mubr.bf16.gmra.mrb[0].mxu0 %v211
  %v566 = vpop.f32.mrb[0].mxu0
  %v567 = vadd.f32 %v265, %v566
  %v568 = vpop.f32.mrb[0].mxu0
  %v569 = vadd.f32 %v269, %v568
  %v570 = vpop.f32.mrb[0].mxu0
  %v571 = vadd.f32 %v265, %v570
  %v572 = vpop.f32.mrb[0].mxu0
  %v573 = vadd.f32 %v269, %v572
  %574 = vdwg.mxu0
  %575 = vmatprep.subr.bf16.mxu0 %v439
  %576 = vmatpush1.bf16.msra.mxu0 %v438
  %577 = vmatprep.subr.bf16.mxu0 %v445
  %578 = vmatpush1.bf16.msra.mxu0 %v444
  %579 = vmatprep.subr.bf16.mxu0 %v451
  %580 = vmatpush1.bf16.msra.mxu0 %v450
  %581 = vmatprep.subr.bf16.mxu0 %v457
  %582 = vmatpush1.bf16.msra.mxu0 %v456
  %583 = vmatprep.subr.bf16.mxu0 %v463
  %584 = vmatpush1.bf16.msra.mxu0 %v462
  %585 = vmatprep.subr.bf16.mxu0 %v469
  %586 = vmatpush1.bf16.msra.mxu0 %v468
  %587 = vmatprep.subr.bf16.mxu0 %v475
  %588 = vmatpush1.bf16.msra.mxu0 %v474
  %589 = vmatprep.subr.bf16.mxu0 %v481
  %590 = vmatpush1.bf16.msra.mxu0 %v480
  %591 = vmatprep.subr.bf16.mxu0 0
  %592 = vmatpush1.bf16.msra.mxu0 0
  %593 = vmatprep.subr.bf16.mxu0 0
  %594 = vmatpush1.bf16.msra.mxu0 0
  %595 = vmatprep.subr.bf16.mxu0 0
  %596 = vmatpush1.bf16.msra.mxu0 0
  %597 = vmatprep.subr.bf16.mxu0 0
  %598 = vmatpush1.bf16.msra.mxu0 0
  %599 = vmatprep.subr.bf16.mxu0 0
  %600 = vmatpush1.bf16.msra.mxu0 0
  %601 = vmatprep.subr.bf16.mxu0 0
  %602 = vmatpush1.bf16.msra.mxu0 0
  %603 = vmatprep.subr.bf16.mxu0 0
  %604 = vmatpush1.bf16.msra.mxu0 0
  %605 = vmatprep.subr.bf16.mxu0 0
  %606 = vmatpush1.bf16.msra.mxu0 0
  %607 = vmatprep.mubr.bf16.mxu0 0
  %608 = vmatmul.mubr.bf16.gmra.mrb[0].mxu0 %v211
  %v609 = vpop.f32.mrb[0].mxu0
  %v610 = vadd.f32 %v273, %v609
  %v611 = vpop.f32.mrb[0].mxu0
  %v612 = vadd.f32 %v277, %v611
  %v613 = vpop.f32.mrb[0].mxu0
  %v614 = vadd.f32 %v273, %v613
  %v615 = vpop.f32.mrb[0].mxu0
  %v616 = vadd.f32 %v277, %v615
  %617 = vdwg.mxu0
  %618 = vmatprep.subr.bf16.mxu0 %v441
  %619 = vmatpush1.bf16.msra.mxu0 %v440
  %620 = vmatprep.subr.bf16.mxu0 %v447
  %621 = vmatpush1.bf16.msra.mxu0 %v446
  %622 = vmatprep.subr.bf16.mxu0 %v453
  %623 = vmatpush1.bf16.msra.mxu0 %v452
  %624 = vmatprep.subr.bf16.mxu0 %v459
  %625 = vmatpush1.bf16.msra.mxu0 %v458
  %626 = vmatprep.subr.bf16.mxu0 %v465
  %627 = vmatpush1.bf16.msra.mxu0 %v464
  %628 = vmatprep.subr.bf16.mxu0 %v471
  %629 = vmatpush1.bf16.msra.mxu0 %v470
  %630 = vmatprep.subr.bf16.mxu0 %v477
  %631 = vmatpush1.bf16.msra.mxu0 %v476
  %632 = vmatprep.subr.bf16.mxu0 %v483
  %633 = vmatpush1.bf16.msra.mxu0 %v482
  %634 = vmatprep.subr.bf16.mxu0 0
  %635 = vmatpush1.bf16.msra.mxu0 0
  %636 = vmatprep.subr.bf16.mxu0 0
  %637 = vmatpush1.bf16.msra.mxu0 0
  %638 = vmatprep.subr.bf16.mxu0 0
  %639 = vmatpush1.bf16.msra.mxu0 0
  %640 = vmatprep.subr.bf16.mxu0 0
  %641 = vmatpush1.bf16.msra.mxu0 0
  %642 = vmatprep.subr.bf16.mxu0 0
  %643 = vmatpush1.bf16.msra.mxu0 0
  %644 = vmatprep.subr.bf16.mxu0 0
  %645 = vmatpush1.bf16.msra.mxu0 0
  %646 = vmatprep.subr.bf16.mxu0 0
  %647 = vmatpush1.bf16.msra.mxu0 0
  %648 = vmatprep.subr.bf16.mxu0 0
  %649 = vmatpush1.bf16.msra.mxu0 0
  %650 = vmatprep.mubr.bf16.mxu0 0
  %651 = vmatmul.mubr.bf16.gmra.mrb[0].mxu0 %v211
  %v652 = vpop.f32.mrb[0].mxu0
  %v653 = vadd.f32 %v281, %v652
  %v654 = vpop.f32.mrb[0].mxu0
  %v655 = vadd.f32 %v285, %v654
  %v656 = vpop.f32.mrb[0].mxu0
  %v657 = vadd.f32 %v281, %v656
  %v658 = vpop.f32.mrb[0].mxu0
  %v659 = vadd.f32 %v285, %v658
  %660 = vdwg.mxu0
  %v661 = vmax.f32 %v567, %v610
  %v662 = vmax.f32 %v569, %v612
  %v663 = vmax.f32 %v661, %v653
  %vm664 = vcmask 900096
  %v665 = vsel %vm664, %v655, -inf
  %v666 = vmax.f32 %v662, %v665
  %v667 = vmax.f32 %v663, %v666
  %668 = vmax.xlane.f32.xlu0 %v667
  %v669 = vpop.xlane.xlu0 %668
  %v670 = vmax.f32 %v571, %v614
  %v671 = vmax.f32 %v573, %v616
  %v672 = vmax.f32 %v670, %v657
  %v673 = vsel %vm664, %v659, -inf
  %v674 = vmax.f32 %v671, %v673
  %v675 = vmax.f32 %v672, %v674
  %676 = vmax.xlane.f32.xlu0 %v675
  %v677 = vpop.xlane.xlu0 %676
  %v678 = vsub.f32 %v567, %v669
  %v679 = vsub.f32 %v569, %v669
  %v680 = vsub.f32 %v610, %v669
  %v681 = vsub.f32 %v612, %v669
  %v682 = vsub.f32 %v653, %v669
  %v683 = vsub.f32 %v655, %v669
  %v684 = vsub.f32 %v571, %v677
  %v685 = vsub.f32 %v573, %v677
  %v686 = vsub.f32 %v614, %v677
  %v687 = vsub.f32 %v616, %v677
  %v688 = vsub.f32 %v657, %v677
  %v689 = vsub.f32 %v659, %v677
  %v690 = vmul.f32 %v678, 1.442695
  %v691 = vpow.pop %v690
  %v692 = vmul.f32 %v679, 1.442695
  %v693 = vpow.pop %v692
  %v694 = vmul.f32 %v680, 1.442695
  %v695 = vpow.pop %v694
  %v696 = vmul.f32 %v681, 1.442695
  %v697 = vpow.pop %v696
  %v698 = vmul.f32 %v682, 1.442695
  %v699 = vpow.pop %v698
  %v700 = vmul.f32 %v683, 1.442695
  %v701 = vpow.pop %v700
  %v702 = vmul.f32 %v684, 1.442695
  %v703 = vpow.pop %v702
  %v704 = vmul.f32 %v685, 1.442695
  %v705 = vpow.pop %v704
  %v706 = vmul.f32 %v686, 1.442695
  %v707 = vpow.pop %v706
  %v708 = vmul.f32 %v687, 1.442695
  %v709 = vpow.pop %v708
  %v710 = vmul.f32 %v688, 1.442695
  %v711 = vpow.pop %v710
  %v712 = vmul.f32 %v689, 1.442695
  %v713 = vpow.pop %v712
  %v714 = vadd.f32 %v691, %v693
  %v715 = vadd.f32 %v714, %v695
  %v716 = vadd.f32 %v715, %v697
  %v717 = vadd.f32 %v716, %v699
  %v718 = vsel %vm664, %v701, 0.0
  %v719 = vadd.f32 %v717, %v718
  %720 = vadd.xlane.f32.xlu0 %v719
  %v721 = vpop.xlane.xlu0 %720
  %v722 = vadd.f32 %v703, %v705
  %v723 = vadd.f32 %v722, %v707
  %v724 = vadd.f32 %v723, %v709
  %v725 = vadd.f32 %v724, %v711
  %v726 = vsel %vm664, %v713, 0.0
  %v727 = vadd.f32 %v725, %v726
  %728 = vadd.xlane.f32.xlu0 %v727
  %v729 = vpop.xlane.xlu0 %728
  %v730 = vrcp.pop %v721
  %v731 = vmul.f32 %v691, %v730
  %v732 = vmul.f32 %v693, %v730
  %v733 = vmul.f32 %v695, %v730
  %v734 = vmul.f32 %v697, %v730
  %v735 = vmul.f32 %v699, %v730
  %v736 = vmul.f32 %v701, %v730
  %v737 = vrcp.pop %v729
  %v738 = vmul.f32 %v703, %v737
  %v739 = vmul.f32 %v705, %v737
  %v740 = vmul.f32 %v707, %v737
  %v741 = vmul.f32 %v709, %v737
  %v742 = vmul.f32 %v711, %v737
  %v743 = vmul.f32 %v713, %v737
  %744 = vst [vmem:[%s5] sm:$0xff] %v731
  %745 = vst [vmem:[%s5 + $0x8] sm:$0xff] %v732
  %746 = vst [vmem:[%s5 + $0x10] sm:$0xff] %v733
  %747 = vst [vmem:[%s5 + $0x18] sm:$0xff] %v734
  %748 = vst [vmem:[%s5 + $0x20] sm:$0xff] %v735
  %749 = vst.msk [vmem:[%s5 + $0x28] sm:$0xff] %vm664, %v736
  %750 = vst [vmem:[%s5 + $0x30] sm:$0xff] %v738
  %751 = vst [vmem:[%s5 + $0x38] sm:$0xff] %v739
  %752 = vst [vmem:[%s5 + $0x40] sm:$0xff] %v740
  %753 = vst [vmem:[%s5 + $0x48] sm:$0xff] %v741
  %754 = vst [vmem:[%s5 + $0x50] sm:$0xff] %v742
  %755 = vst.msk [vmem:[%s5 + $0x58] sm:$0xff] %vm664, %v743
  // Predicated region
  $region22: #{policy_forward.1} parent=0 // pred_check
    _
  $region23: #{policy_forward.1} parent=0 // pred_check_branch
    %757 = sbr.rel (0) target = $region25
  $region24: #{policy_forward.1} parent=0 // pred_region
    _
  $region25: #{policy_forward.1} parent=0 // pred_fallthru
    _
  // Predicated region
  $region26: #{policy_forward.1} parent=0 // pred_check
    _
  $region27: #{policy_forward.1} parent=0 // pred_check_branch
    %759 = sbr.rel (0) target = $region29
  $region28: #{policy_forward.1} parent=0 // pred_region
    _
  $region29: #{policy_forward.1} parent=0 // pred_fallthru
    _

</llo_original>
